<compile_context>
chip_gen: v5e
topology: v5e:2x2
jax: 0.10.0
libtpu: 0.0.40
codegen_flags: <defaults>
</compile_context>

<pallas_src>
import jax
import jax.numpy as jnp
import numpy as np
from jax.experimental import pallas as pl
from jax.experimental.pallas import tpu as pltpu


def decoder_cell_kernel(x_ref, h0_ref, c0_ref, w_ih_ref, w_hh_ref, b_g_ref,
                        w_out_ref, b_out_ref, logp_ref, hc_ref, h_sc, c_sc):
    t = pl.program_id(0)
    H = h_sc.shape[1]

    # Load the initial recurrent state into VMEM scratch on the first step.
    @pl.when(t == 0)
    def _():
        h_sc[...] = h0_ref[...]
        c_sc[...] = c0_ref[...]

    x = x_ref[0]                          # (B, I)  f32, current time step
    h = h_sc[...]                         # (B, H)
    c = c_sc[...]                         # (B, H)

    # Gate pre-activations: two small MXU pushes + one (1, 4H) bias broadcast.
    gates = (jnp.dot(x, w_ih_ref[...], preferred_element_type=jnp.float32)
             + jnp.dot(h, w_hh_ref[...], preferred_element_type=jnp.float32)
             + b_g_ref[...])              # (B, 4H)

    # Two full-width EUP passes, then lane-slice the PyTorch-ordered gates.
    sig = jax.nn.sigmoid(gates)
    th = jnp.tanh(gates)
    i_g = sig[:, 0 * H:1 * H]
    f_g = sig[:, 1 * H:2 * H]
    g_g = th[:, 2 * H:3 * H]
    o_g = sig[:, 3 * H:4 * H]

    c_new = f_g * c + i_g * g_g
    h_new = o_g * jnp.tanh(c_new)
    h_sc[...] = h_new                     # carry to next grid step (stays in VMEM)
    c_sc[...] = c_new

    # Output projection (lane-dense: O padded to a multiple of 128) and a
    # numerically-stable log_softmax.  Padded class lanes carry bias -1e30 so
    # they contribute exp(~-1e30) == 0 to the normalizer (f32 only!).
    logits = (jnp.dot(h_new, w_out_ref[...], preferred_element_type=jnp.float32)
              + b_out_ref[...])           # (B, O_pad)
    m = jnp.max(logits, axis=1, keepdims=True)
    z = logits - m
    lse = jnp.log(jnp.sum(jnp.exp(z), axis=1, keepdims=True))
    logp_ref[0] = (z - lse).astype(logp_ref.dtype)

    # Final-state writeback only once, on the last grid step.
    @pl.when(t == pl.num_programs(0) - 1)
    def _():
        hc_ref[:, 0:H] = h_new.astype(hc_ref.dtype)
        hc_ref[:, H:2 * H] = c_new.astype(hc_ref.dtype)


def _round_up(x, m):
    return ((x + m - 1) // m) * m


def _decoder_cell_call(xs, h0, c0, params):
    """xs: (T, B, I), h0/c0: (B, H).
       Returns (logp (T, B, O_pad), hc (B, 2H))."""
    T, B, I = xs.shape
    H = h0.shape[-1]
    O_pad = params["w_out_pad"].shape[-1]

    const = lambda t: (0, 0)
    grid_spec = pltpu.PrefetchScalarGridSpec(
        num_scalar_prefetch=0,
        grid=(T,),
        in_specs=[
            pl.BlockSpec((1, B, I), lambda t: (t, 0, 0)),   # x_t streamed per step
            pl.BlockSpec((B, H), const),                    # h0 (read at t==0)
            pl.BlockSpec((B, H), const),                    # c0 (read at t==0)
            pl.BlockSpec((I, 4 * H), const),                # W_ih^T   (resident)
            pl.BlockSpec((H, 4 * H), const),                # W_hh^T   (resident)
            pl.BlockSpec((1, 4 * H), const),                # fused gate bias
            pl.BlockSpec((H, O_pad), const),                # W_out    (resident)
            pl.BlockSpec((1, O_pad), const),                # padded out bias
        ],
        out_specs=(
            pl.BlockSpec((1, B, O_pad), lambda t: (t, 0, 0)),  # per-step log-probs
            pl.BlockSpec((B, 2 * H), const),                   # [h_T | c_T]
        ),
        scratch_shapes=[
            pltpu.VMEM((B, H), jnp.float32),   # h carry
            pltpu.VMEM((B, H), jnp.float32),   # c carry
        ],
    )
    logp, hc = pl.pallas_call(
        decoder_cell_kernel,
        out_shape=(
            jax.ShapeDtypeStruct((T, B, O_pad), jnp.float32),
            jax.ShapeDtypeStruct((B, 2 * H), jnp.float32),
        ),
        grid_spec=grid_spec,
        compiler_params=pltpu.CompilerParams(
            dimension_semantics=("arbitrary",)),
    )(xs, h0, c0, params["w_ih_t"], params["w_hh_t"], params["b_gates"],
      params["w_out_pad"], params["b_out_pad"])
    return logp, hc


def decoder_cell_forward(x, hidden, params):
    """Original module semantics: one step.
       x: (B, 1, I)  (batch_first, seq_len == 1)
       hidden: (h0, c0), each (1, B, H)   (num_layers == 1)
       returns (log_probs (B, O), (h1 (1,B,H), c1 (1,B,H)))"""
    h0, c0 = hidden
    B, S, I = x.shape
    assert S == 1
    H = h0.shape[-1]
    O = params["output_size"]

    xs = x.reshape(B, I)[None]            # (1, B, I)
    logp, hc = _decoder_cell_call(xs, h0.reshape(B, H), c0.reshape(B, H), params)
    logp = logp[0, :, :O]
    h1 = hc[:, :H].reshape(1, B, H)
    c1 = hc[:, H:].reshape(1, B, H)
    return logp, (h1, c1)


def decoder_cell_decode(xs, hidden, params):
    """Time-fused multi-step decode (the same cell stepped T times in ONE
       pallas_call; teacher-forced inputs).
       xs: (T, B, I); hidden: (h0, c0) each (1, B, H).
       Returns (log_probs (T, B, O), (h_T (1,B,H), c_T (1,B,H)))."""
    h0, c0 = hidden
    T, B, I = xs.shape
    H = h0.shape[-1]
    O = params["output_size"]
    logp, hc = _decoder_cell_call(xs, h0.reshape(B, H), c0.reshape(B, H), params)
    return (logp[:, :, :O],
            (hc[:, :H].reshape(1, B, H), hc[:, H:].reshape(1, B, H)))


def init_params(key, input_size, hidden_size, output_size):
    ks = jax.random.split(key, 6)
    bound = 1.0 / np.sqrt(hidden_size)
    u = lambda k, shape: jax.random.uniform(k, shape, jnp.float32, -bound, bound)
    # PyTorch layouts: W_ih (4H, I), W_hh (4H, H), gate order i, f, g, o.
    w_ih = u(ks[0], (4 * hidden_size, input_size))
    w_hh = u(ks[1], (4 * hidden_size, hidden_size))
    b_ih = u(ks[2], (4 * hidden_size,))
    b_hh = u(ks[3], (4 * hidden_size,))
    w_out = u(ks[4], (hidden_size, output_size))     # pre-transposed for h @ W
    b_out = u(ks[5], (1, output_size))

    # Constant padding hoisted here (built once, not per decode step):
    # padded class lanes get weight 0 and bias -1e30 so exp() contributes 0.
    O_pad = _round_up(max(output_size, 128), 128)
    w_out_pad = jnp.pad(w_out, ((0, 0), (0, O_pad - output_size)))
    b_out_pad = jnp.pad(b_out, ((0, 0), (0, O_pad - output_size)),
                        constant_values=-1e30)
    return {
        "w_ih_t": w_ih.T,                                  # (I, 4H)
        "w_hh_t": w_hh.T,                                  # (H, 4H)
        "b_gates": (b_ih + b_hh).reshape(1, 4 * hidden_size),
        "w_out_pad": w_out_pad,                            # (H, O_pad)
        "b_out_pad": b_out_pad,                            # (1, O_pad)
        "w_out": w_out,                                    # unpadded (reference)
        "b_out": b_out,
        "output_size": output_size,
    }


def reference_step(x2, h, c, params):
    """Plain-JAX single LSTM step + Linear + log_softmax (mirrors torch)."""
    H = h.shape[-1]
    gates = x2 @ params["w_ih_t"] + h @ params["w_hh_t"] + params["b_gates"]
    i_g = jax.nn.sigmoid(gates[:, 0 * H:1 * H])
    f_g = jax.nn.sigmoid(gates[:, 1 * H:2 * H])
    g_g = jnp.tanh(gates[:, 2 * H:3 * H])
    o_g = jax.nn.sigmoid(gates[:, 3 * H:4 * H])
    c_new = f_g * c + i_g * g_g
    h_new = o_g * jnp.tanh(c_new)
    logits = h_new @ params["w_out"] + params["b_out"]
    return jax.nn.log_softmax(logits, axis=1), (h_new, c_new)


if __name__ == "__main__":
    B, I, H, O, T = 2, 32, 32, 64, 4   # batch, input, hidden, output, decode steps

    key = jax.random.PRNGKey(0)
    kx, kxs, kh, kc, kp = jax.random.split(key, 5)
    params = init_params(kp, I, H, O)

    x = jax.random.normal(kx, (B, 1, I), jnp.float32)       # (batch, seq=1, input)
    h0 = jax.random.normal(kh, (1, B, H), jnp.float32)      # (num_layers=1, B, H)
    c0 = jax.random.normal(kc, (1, B, H), jnp.float32)

    # 1) Original module semantics: single step.
    logp, (h1, c1) = decoder_cell_forward(x, (h0, c0), params)
    jax.block_until_ready((logp, h1, c1))
    logp_r, (h_r, c_r) = reference_step(x.reshape(B, I), h0[0], c0[0], params)
    assert np.allclose(np.asarray(logp), np.asarray(logp_r), atol=1e-5)
    assert np.allclose(np.asarray(h1[0]), np.asarray(h_r), atol=1e-5)
    assert np.allclose(np.asarray(c1[0]), np.asarray(c_r), atol=1e-5)

    # 2) Time-fused decode: T steps of the same cell in one pallas_call.
    xs = jax.random.normal(kxs, (T, B, I), jnp.float32)
    logps, (hT, cT) = decoder_cell_decode(xs, (h0, c0), params)
    jax.block_until_ready((logps, hT, cT))
    h, c = h0[0], c0[0]
    for t in range(T):
        lp_t, (h, c) = reference_step(xs[t], h, c, params)
        assert np.allclose(np.asarray(logps[t]), np.asarray(lp_t), atol=1e-5)
    assert np.allclose(np.asarray(hT[0]), np.asarray(h), atol=1e-5)
    assert np.allclose(np.asarray(cT[0]), np.asarray(c), atol=1e-5)

    print("KERNEL_OK")
</pallas_src>

<mosaic_0001>
module attributes {stable_mosaic.version = 11 : i64} {
  func.func @decoder_cell_kernel(%arg0: i32, %arg1: memref<1x2x32xf32, #tpu.memory_space<vmem>>, %arg2: memref<2x32xf32, #tpu.memory_space<vmem>>, %arg3: memref<2x32xf32, #tpu.memory_space<vmem>>, %arg4: memref<32x128xf32, #tpu.memory_space<vmem>>, %arg5: memref<32x128xf32, #tpu.memory_space<vmem>>, %arg6: memref<1x128xf32, #tpu.memory_space<vmem>>, %arg7: memref<32x128xf32, #tpu.memory_space<vmem>>, %arg8: memref<1x128xf32, #tpu.memory_space<vmem>>, %arg9: memref<1x2x128xf32, #tpu.memory_space<vmem>>, %arg10: memref<2x64xf32, #tpu.memory_space<vmem>>, %arg11: memref<2x32xf32, #tpu.memory_space<vmem>>, %arg12: memref<2x32xf32, #tpu.memory_space<vmem>>) attributes {dimension_semantics = [#tpu.dimension_semantics<arbitrary>], iteration_bounds = array<i64: 1>, scalar_prefetch = 0 : i64, scratch_operands = 2 : i64, tpu.core_type = #tpu.core_type<tc>, window_params = [{transform_indices = @transform_0, window_bounds = array<i64: 1, 2, 32>}, {pipeline_mode = #tpu.pipeline_mode<synchronous>, transform_indices = @transform_1, window_bounds = array<i64: 2, 32>}, {pipeline_mode = #tpu.pipeline_mode<synchronous>, transform_indices = @transform_2, window_bounds = array<i64: 2, 32>}, {pipeline_mode = #tpu.pipeline_mode<synchronous>, transform_indices = @transform_3, window_bounds = array<i64: 32, 128>}, {pipeline_mode = #tpu.pipeline_mode<synchronous>, transform_indices = @transform_4, window_bounds = array<i64: 32, 128>}, {pipeline_mode = #tpu.pipeline_mode<synchronous>, transform_indices = @transform_5, window_bounds = array<i64: 1, 128>}, {pipeline_mode = #tpu.pipeline_mode<synchronous>, transform_indices = @transform_6, window_bounds = array<i64: 32, 128>}, {pipeline_mode = #tpu.pipeline_mode<synchronous>, transform_indices = @transform_7, window_bounds = array<i64: 1, 128>}, {transform_indices = @transform_8, window_bounds = array<i64: 1, 2, 128>}, {pipeline_mode = #tpu.pipeline_mode<synchronous>, transform_indices = @transform_9, window_bounds = array<i64: 2, 64>}]} {
    %c0_i32 = arith.constant 0 : i32
    %0 = arith.cmpi eq, %arg0, %c0_i32 : i32
    %1 = arith.extui %0 : i1 to i32
    %c0_i32_0 = arith.constant 0 : i32
    %2 = arith.cmpi ne, %1, %c0_i32_0 : i32
    scf.if %2 {
      %c0_31 = arith.constant 0 : index
      %c0_32 = arith.constant 0 : index
      %53 = vector.load %arg2[%c0_31, %c0_32] : memref<2x32xf32, #tpu.memory_space<vmem>>, vector<2x32xf32>
      %c0_33 = arith.constant 0 : index
      %c0_34 = arith.constant 0 : index
      %54 = vector.load %arg11[%c0_33, %c0_34] : memref<2x32xf32, #tpu.memory_space<vmem>>, vector<2x32xf32>
      tpu.vector_store %arg11[%c0_33, %c0_34], %53 {strides = array<i32>} : memref<2x32xf32, #tpu.memory_space<vmem>>, vector<2x32xf32>,
      %c0_35 = arith.constant 0 : index
      %c0_36 = arith.constant 0 : index
      %55 = vector.load %arg3[%c0_35, %c0_36] : memref<2x32xf32, #tpu.memory_space<vmem>>, vector<2x32xf32>
      %c0_37 = arith.constant 0 : index
      %c0_38 = arith.constant 0 : index
      %56 = vector.load %arg12[%c0_37, %c0_38] : memref<2x32xf32, #tpu.memory_space<vmem>>, vector<2x32xf32>
      tpu.vector_store %arg12[%c0_37, %c0_38], %55 {strides = array<i32>} : memref<2x32xf32, #tpu.memory_space<vmem>>, vector<2x32xf32>,
    } else {
    }
    %c0 = arith.constant 0 : index
    %c0_1 = arith.constant 0 : index
    %c0_2 = arith.constant 0 : index
    %3 = vector.load %arg1[%c0, %c0_1, %c0_2] : memref<1x2x32xf32, #tpu.memory_space<vmem>>, vector<1x2x32xf32>
    %4 = vector.shape_cast %3 : vector<1x2x32xf32> to vector<2x32xf32>
    %c0_3 = arith.constant 0 : index
    %c0_4 = arith.constant 0 : index
    %5 = vector.load %arg11[%c0_3, %c0_4] : memref<2x32xf32, #tpu.memory_space<vmem>>, vector<2x32xf32>
    %c0_5 = arith.constant 0 : index
    %c0_6 = arith.constant 0 : index
    %6 = vector.load %arg12[%c0_5, %c0_6] : memref<2x32xf32, #tpu.memory_space<vmem>>, vector<2x32xf32>
    %c0_7 = arith.constant 0 : index
    %c0_8 = arith.constant 0 : index
    %7 = vector.load %arg4[%c0_7, %c0_8] : memref<32x128xf32, #tpu.memory_space<vmem>>, vector<32x128xf32>
    %cst = arith.constant dense<0.000000e+00> : vector<2x128xf32>
    %8 = tpu.matmul %4, %7, %cst {dimension_numbers = #tpu.dot_dimension_numbers<[1], [0], [0], [1], [0, 0, 1, 1], [], []>} : vector<2x32xf32>, vector<32x128xf32>, vector<2x128xf32> -> vector<2x128xf32>
    %c0_9 = arith.constant 0 : index
    %c0_10 = arith.constant 0 : index
    %9 = vector.load %arg5[%c0_9, %c0_10] : memref<32x128xf32, #tpu.memory_space<vmem>>, vector<32x128xf32>
    %cst_11 = arith.constant dense<0.000000e+00> : vector<2x128xf32>
    %10 = tpu.matmul %5, %9, %cst_11 {dimension_numbers = #tpu.dot_dimension_numbers<[1], [0], [0], [1], [0, 0, 1, 1], [], []>} : vector<2x32xf32>, vector<32x128xf32>, vector<2x128xf32> -> vector<2x128xf32>
    %11 = arith.addf %8, %10 : vector<2x128xf32>
    %c0_12 = arith.constant 0 : index
    %c0_13 = arith.constant 0 : index
    %12 = vector.load %arg6[%c0_12, %c0_13] : memref<1x128xf32, #tpu.memory_space<vmem>>, vector<1x128xf32>
    %13 = vector.broadcast %12 : vector<1x128xf32> to vector<2x128xf32>
    %14 = arith.addf %11, %13 : vector<2x128xf32>
    %15 = arith.negf %14 : vector<2x128xf32>
    %16 = math.exp %15 : vector<2x128xf32>
    %cst_14 = arith.constant 1.000000e+00 : f32
    %17 = vector.broadcast %cst_14 : f32 to vector<2x128xf32>
    %18 = arith.addf %17, %16 : vector<2x128xf32>
    %19 = arith.divf %17, %18 : vector<2x128xf32>
    %20 = math.tanh %14 : vector<2x128xf32>
    %21 = vector.extract_strided_slice %19 {offsets = [0, 0], sizes = [2, 32], strides = [1, 1]} : vector<2x128xf32> to vector<2x32xf32>
    %22 = vector.extract_strided_slice %19 {offsets = [0, 32], sizes = [2, 32], strides = [1, 1]} : vector<2x128xf32> to vector<2x32xf32>
    %23 = vector.extract_strided_slice %20 {offsets = [0, 64], sizes = [2, 32], strides = [1, 1]} : vector<2x128xf32> to vector<2x32xf32>
    %24 = vector.extract_strided_slice %19 {offsets = [0, 96], sizes = [2, 32], strides = [1, 1]} : vector<2x128xf32> to vector<2x32xf32>
    %25 = arith.mulf %22, %6 : vector<2x32xf32>
    %26 = arith.mulf %21, %23 : vector<2x32xf32>
    %27 = arith.addf %25, %26 : vector<2x32xf32>
    %28 = math.tanh %27 : vector<2x32xf32>
    %29 = arith.mulf %24, %28 : vector<2x32xf32>
    %c0_15 = arith.constant 0 : index
    %c0_16 = arith.constant 0 : index
    %30 = vector.load %arg11[%c0_15, %c0_16] : memref<2x32xf32, #tpu.memory_space<vmem>>, vector<2x32xf32>
    tpu.vector_store %arg11[%c0_15, %c0_16], %29 {strides = array<i32>} : memref<2x32xf32, #tpu.memory_space<vmem>>, vector<2x32xf32>,
    %c0_17 = arith.constant 0 : index
    %c0_18 = arith.constant 0 : index
    %31 = vector.load %arg12[%c0_17, %c0_18] : memref<2x32xf32, #tpu.memory_space<vmem>>, vector<2x32xf32>
    tpu.vector_store %arg12[%c0_17, %c0_18], %27 {strides = array<i32>} : memref<2x32xf32, #tpu.memory_space<vmem>>, vector<2x32xf32>,
    %c0_19 = arith.constant 0 : index
    %c0_20 = arith.constant 0 : index
    %32 = vector.load %arg7[%c0_19, %c0_20] : memref<32x128xf32, #tpu.memory_space<vmem>>, vector<32x128xf32>
    %cst_21 = arith.constant dense<0.000000e+00> : vector<2x128xf32>
    %33 = tpu.matmul %29, %32, %cst_21 {dimension_numbers = #tpu.dot_dimension_numbers<[1], [0], [0], [1], [0, 0, 1, 1], [], []>} : vector<2x32xf32>, vector<32x128xf32>, vector<2x128xf32> -> vector<2x128xf32>
    %c0_22 = arith.constant 0 : index
    %c0_23 = arith.constant 0 : index
    %34 = vector.load %arg8[%c0_22, %c0_23] : memref<1x128xf32, #tpu.memory_space<vmem>>, vector<1x128xf32>
    %35 = vector.broadcast %34 : vector<1x128xf32> to vector<2x128xf32>
    %36 = arith.addf %33, %35 : vector<2x128xf32>
    %cst_24 = arith.constant dense<0xFF800000> : vector<2xf32>
    %37 = vector.multi_reduction <maximumf>, %36, %cst_24 [1] : vector<2x128xf32> to vector<2xf32>
    %38 = vector.shape_cast %37 : vector<2xf32> to vector<2x1xf32>
    %39 = vector.broadcast %38 : vector<2x1xf32> to vector<2x128xf32>
    %40 = arith.subf %36, %39 : vector<2x128xf32>
    %41 = math.exp %40 : vector<2x128xf32>
    %cst_25 = arith.constant dense<0.000000e+00> : vector<2xf32>
    %42 = vector.multi_reduction <add>, %41, %cst_25 [1] : vector<2x128xf32> to vector<2xf32>
    %43 = vector.shape_cast %42 : vector<2xf32> to vector<2x1xf32>
    %44 = math.log %43 : vector<2x1xf32>
    %45 = vector.broadcast %44 : vector<2x1xf32> to vector<2x128xf32>
    %46 = arith.subf %40, %45 : vector<2x128xf32>
    %c0_26 = arith.constant 0 : index
    %c0_27 = arith.constant 0 : index
    %c0_28 = arith.constant 0 : index
    %47 = vector.load %arg9[%c0_26, %c0_27, %c0_28] : memref<1x2x128xf32, #tpu.memory_space<vmem>>, vector<1x2x128xf32>
    %48 = vector.shape_cast %47 : vector<1x2x128xf32> to vector<2x128xf32>
    %49 = vector.shape_cast %46 : vector<2x128xf32> to vector<1x2x128xf32>
    tpu.vector_store %arg9[%c0_26, %c0_27, %c0_28], %49 {strides = array<i32>} : memref<1x2x128xf32, #tpu.memory_space<vmem>>, vector<1x2x128xf32>,
    %c0_i32_29 = arith.constant 0 : i32
    %50 = arith.cmpi eq, %arg0, %c0_i32_29 : i32
    %51 = arith.extui %50 : i1 to i32
    %c0_i32_30 = arith.constant 0 : i32
    %52 = arith.cmpi ne, %51, %c0_i32_30 : i32
    scf.if %52 {
      %c0_31 = arith.constant 0 : index
      %c0_32 = arith.constant 0 : index
      %53 = vector.load %arg10[%c0_31, %c0_32] : memref<2x64xf32, #tpu.memory_space<vmem>>, vector<2x32xf32>
      tpu.vector_store %arg10[%c0_31, %c0_32], %29 {strides = array<i32>} : memref<2x64xf32, #tpu.memory_space<vmem>>, vector<2x32xf32>,
      %c0_33 = arith.constant 0 : index
      %c32 = arith.constant 32 : index
      %54 = vector.load %arg10[%c0_33, %c32] : memref<2x64xf32, #tpu.memory_space<vmem>>, vector<2x32xf32>
      tpu.vector_store %arg10[%c0_33, %c32], %27 {strides = array<i32>} : memref<2x64xf32, #tpu.memory_space<vmem>>, vector<2x32xf32>,
    } else {
    }
    return
  }
  func.func @transform_0(%arg0: i32) -> (i32, i32, i32) {
    %c0_i32 = arith.constant 0 : i32
    %c0_i32_0 = arith.constant 0 : i32
    %c0_i32_1 = arith.constant 0 : i32
    return %arg0, %c0_i32, %c0_i32_0 : i32, i32, i32
  }
  func.func @transform_1(%arg0: i32) -> (i32, i32) {
    %c0_i32 = arith.constant 0 : i32
    %c0_i32_0 = arith.constant 0 : i32
    %c0_i32_1 = arith.constant 0 : i32
    return %c0_i32, %c0_i32_0 : i32, i32
  }
  func.func @transform_2(%arg0: i32) -> (i32, i32) {
    %c0_i32 = arith.constant 0 : i32
    %c0_i32_0 = arith.constant 0 : i32
    %c0_i32_1 = arith.constant 0 : i32
    return %c0_i32, %c0_i32_0 : i32, i32
  }
  func.func @transform_3(%arg0: i32) -> (i32, i32) {
    %c0_i32 = arith.constant 0 : i32
    %c0_i32_0 = arith.constant 0 : i32
    %c0_i32_1 = arith.constant 0 : i32
    return %c0_i32, %c0_i32_0 : i32, i32
  }
  func.func @transform_4(%arg0: i32) -> (i32, i32) {
    %c0_i32 = arith.constant 0 : i32
    %c0_i32_0 = arith.constant 0 : i32
    %c0_i32_1 = arith.constant 0 : i32
    return %c0_i32, %c0_i32_0 : i32, i32
  }
  func.func @transform_5(%arg0: i32) -> (i32, i32) {
    %c0_i32 = arith.constant 0 : i32
    %c0_i32_0 = arith.constant 0 : i32
    %c0_i32_1 = arith.constant 0 : i32
    return %c0_i32, %c0_i32_0 : i32, i32
  }
  func.func @transform_6(%arg0: i32) -> (i32, i32) {
    %c0_i32 = arith.constant 0 : i32
    %c0_i32_0 = arith.constant 0 : i32
    %c0_i32_1 = arith.constant 0 : i32
    return %c0_i32, %c0_i32_0 : i32, i32
  }
  func.func @transform_7(%arg0: i32) -> (i32, i32) {
    %c0_i32 = arith.constant 0 : i32
    %c0_i32_0 = arith.constant 0 : i32
    %c0_i32_1 = arith.constant 0 : i32
    return %c0_i32, %c0_i32_0 : i32, i32
  }
  func.func @transform_8(%arg0: i32) -> (i32, i32, i32) {
    %c0_i32 = arith.constant 0 : i32
    %c0_i32_0 = arith.constant 0 : i32
    %c0_i32_1 = arith.constant 0 : i32
    return %arg0, %c0_i32, %c0_i32_0 : i32, i32, i32
  }
  func.func @transform_9(%arg0: i32) -> (i32, i32) {
    %c0_i32 = arith.constant 0 : i32
    %c0_i32_0 = arith.constant 0 : i32
    %c0_i32_1 = arith.constant 0 : i32
    return %c0_i32, %c0_i32_0 : i32, i32
  }
}

</mosaic_0001>

<llo_original>
// kernel: tpu_custom_call.1
$region0: #{tpu_custom_call.1}
  #allocation0 [shape = 'u32[]', space=smem, size = 0x4, offset = 0x4, fixed_abs, tag = 'smem constant byte address 0x4 - core index']
  #allocation1 [shape = 'u32[72,128]{1,0:T(1,128)}', space=vmem, size = 0x9000, scoped, tag = 'internal scratch']
  #allocation2 [shape = 'f32[2,32]{1,0:T(2,128)}', space=vmem, size = 0x400, scoped, tag = 'scratch operand']
  #allocation3 [shape = 'f32[2,32]{1,0:T(2,128)}', space=vmem, size = 0x400, scoped, tag = 'scratch operand']
  %s0 = inlined_call_operand.hbm [shape: f32[1,2,32], index: 0, kind: input, shape index: {}]
  %s1 = inlined_call_operand.hbm [shape: f32[2,32], index: 1, kind: input, shape index: {}]
  %s2 = inlined_call_operand.hbm [shape: f32[2,32], index: 2, kind: input, shape index: {}]
  %s3 = inlined_call_operand.hbm [shape: f32[32,128], index: 3, kind: input, shape index: {}]
  %s4 = inlined_call_operand.hbm [shape: f32[32,128], index: 4, kind: input, shape index: {}]
  %s5 = inlined_call_operand.vmem [shape: f32[1,128], index: 5, kind: input, shape index: {}]
  %s6 = inlined_call_operand.hbm [shape: f32[32,128], index: 6, kind: input, shape index: {}]
  %s7 = inlined_call_operand.vmem [shape: f32[1,128], index: 7, kind: input, shape index: {}]
  %s8 = inlined_call_operand.hbm [shape: f32[1,2,128], index: 8, kind: output, shape index: {0}]
  %s9 = inlined_call_operand.hbm [shape: f32[2,64], index: 9, kind: output, shape index: {1}]
  %10 = xla_tuple %s8, %s9
  %s11 = sld [smem:[#allocation0]]
  $region82: #{tpu_custom_call.1} parent=0
    _
  %s13 = ssub.s32 1, %s11
  %s14 = scalar_select 0, %s13, %s11
  $region1: #{tpu_custom_call.1} parent=0
    #allocation4 [shape = 'u8[1024]{0}', space=vmem, size = 0x400, scoped, tag = 'input window, operand 0, single buffered']
    #allocation5 [shape = 's32[1]{0}', space=sflag, size = 0x4, scoped, tag = 'scoped memory for tpu_custom_call.1']
    #allocation6 [shape = 's32[1]{0}', space=sflag, size = 0x4, scoped, tag = 'scoped memory for tpu_custom_call.1']
    #allocation7 [shape = 'u8[1024]{0}', space=vmem, size = 0x400, scoped, tag = 'input window, operand 1, single buffered']
    #allocation8 [shape = 's32[1]{0}', space=sflag, size = 0x4, scoped, tag = 'scoped memory for tpu_custom_call.1']
    #allocation9 [shape = 'u8[1024]{0}', space=vmem, size = 0x400, scoped, tag = 'input window, operand 2, single buffered']
    #allocation10 [shape = 'u8[16384]{0}', space=vmem, size = 0x4000, scoped, tag = 'input window, operand 3, single buffered']
    #allocation11 [shape = 's32[1]{0}', space=sflag, size = 0x4, scoped, tag = 'scoped memory for tpu_custom_call.1']
    #allocation12 [shape = 'u8[16384]{0}', space=vmem, size = 0x4000, scoped, tag = 'input window, operand 4, single buffered']
    #allocation13 [shape = 'u8[16384]{0}', space=vmem, size = 0x4000, scoped, tag = 'input window, operand 6, single buffered']
    #allocation14 [shape = 's32[1]{0}', space=sflag, size = 0x4, scoped, tag = 'scoped memory for tpu_custom_call.1']
    #allocation15 [shape = 'u8[1024]{0}', space=vmem, size = 0x400, scoped, tag = 'output window, operand 0, single buffered']
    #allocation16 [shape = 'u8[1024]{0}', space=vmem, size = 0x400, scoped, tag = 'output window, operand 1, single buffered']
    #allocation17 [shape = 's32[1]{0}', space=sflag, size = 0x4, scoped, tag = 'scoped memory for tpu_custom_call.1']
    %15 = vsyncpa [#allocation5], 0
    %16 = vsyncpa [#allocation8], 0
    %17 = vsyncpa [#allocation11], 0
    %18 = vsyncpa [#allocation14], 0
    %19 = vsyncpa [#allocation6], 0
    %20 = vsyncpa [#allocation17], 0
    // Predicated region
    $region2: #{tpu_custom_call.1} parent=1 // pred_check
      _
    $region3: #{tpu_custom_call.1} parent=1 // pred_check_branch
      %22 = sbr.rel (0) target = $region5
    $region4: #{tpu_custom_call.1} parent=1 // pred_region
      %24 = vsyncadd [#allocation5], 0
      %s26 = sshll.u32 %s0, 4
      %s27 = int_to_ptr.hbm [resolvable:$true] %s26
      %s28 = sshll.u32 [#allocation4], 4
      %s29 = int_to_ptr.vmem [resolvable:$true] %s28
      %31 = dma.hbm_to_vmem [thread:$0]  %s27, 32, %s29, [#allocation5]
    $region5: #{tpu_custom_call.1} parent=1 // pred_fallthru
      _
    // Predicated region
    $region6: #{tpu_custom_call.1} parent=1 // pred_check
      _
    $region7: #{tpu_custom_call.1} parent=1 // pred_check_branch
      %33 = sbr.rel (0) target = $region9
    $region8: #{tpu_custom_call.1} parent=1 // pred_region
      %35 = vsyncadd [#allocation8], 0
      %s37 = sshll.u32 %s1, 4
      %s38 = int_to_ptr.hbm [resolvable:$true] %s37
      %s39 = sshll.u32 [#allocation7], 4
      %s40 = int_to_ptr.vmem [resolvable:$true] %s39
      %42 = dma.hbm_to_vmem [thread:$0]  %s38, 32, %s40, [#allocation8]
    $region9: #{tpu_custom_call.1} parent=1 // pred_fallthru
      _
    // Predicated region
    $region10: #{tpu_custom_call.1} parent=1 // pred_check
      _
    $region11: #{tpu_custom_call.1} parent=1 // pred_check_branch
      %44 = sbr.rel (0) target = $region13
    $region12: #{tpu_custom_call.1} parent=1 // pred_region
      %46 = vsyncadd [#allocation8], 0
      %s48 = sshll.u32 %s2, 4
      %s49 = int_to_ptr.hbm [resolvable:$true] %s48
      %s50 = sshll.u32 [#allocation9], 4
      %s51 = int_to_ptr.vmem [resolvable:$true] %s50
      %53 = dma.hbm_to_vmem [thread:$0]  %s49, 32, %s51, [#allocation8]
    $region13: #{tpu_custom_call.1} parent=1 // pred_fallthru
      _
    // Predicated region
    $region14: #{tpu_custom_call.1} parent=1 // pred_check
      _
    $region15: #{tpu_custom_call.1} parent=1 // pred_check_branch
      %55 = sbr.rel (0) target = $region17
    $region16: #{tpu_custom_call.1} parent=1 // pred_region
      %57 = vsyncadd [#allocation11], 0
      %s58 = sshll.u32 %s3, 4
      %s59 = int_to_ptr.hbm [resolvable:$true] %s58
      %s60 = sshll.u32 [#allocation10], 4
      %s61 = int_to_ptr.vmem [resolvable:$true] %s60
      %66 = dma.hbm_to_vmem [thread:$0]  %s59, 512, %s61, [#allocation11], 128, 128, 8
    $region17: #{tpu_custom_call.1} parent=1 // pred_fallthru
      _
    // Predicated region
    $region18: #{tpu_custom_call.1} parent=1 // pred_check
      _
    $region19: #{tpu_custom_call.1} parent=1 // pred_check_branch
      %68 = sbr.rel (0) target = $region21
    $region20: #{tpu_custom_call.1} parent=1 // pred_region
      %70 = vsyncadd [#allocation11], 0
      %s71 = sshll.u32 %s4, 4
      %s72 = int_to_ptr.hbm [resolvable:$true] %s71
      %s73 = sshll.u32 [#allocation12], 4
      %s74 = int_to_ptr.vmem [resolvable:$true] %s73
      %79 = dma.hbm_to_vmem [thread:$0]  %s72, 512, %s74, [#allocation11], 128, 128, 8
    $region21: #{tpu_custom_call.1} parent=1 // pred_fallthru
      _
    // Predicated region
    $region22: #{tpu_custom_call.1} parent=1 // pred_check
      _
    $region23: #{tpu_custom_call.1} parent=1 // pred_check_branch
      %81 = sbr.rel (0) target = $region25
    $region24: #{tpu_custom_call.1} parent=1 // pred_region
      _
    $region25: #{tpu_custom_call.1} parent=1 // pred_fallthru
      _
    // Predicated region
    $region26: #{tpu_custom_call.1} parent=1 // pred_check
      _
    $region27: #{tpu_custom_call.1} parent=1 // pred_check_branch
      %83 = sbr.rel (0) target = $region29
    $region28: #{tpu_custom_call.1} parent=1 // pred_region
      %85 = vsyncadd [#allocation14], 0
      %s86 = sshll.u32 %s6, 4
      %s87 = int_to_ptr.hbm [resolvable:$true] %s86
      %s88 = sshll.u32 [#allocation13], 4
      %s89 = int_to_ptr.vmem [resolvable:$true] %s88
      %94 = dma.hbm_to_vmem [thread:$0]  %s87, 512, %s89, [#allocation14], 128, 128, 8
    $region29: #{tpu_custom_call.1} parent=1 // pred_fallthru
      _
    // Predicated region
    $region30: #{tpu_custom_call.1} parent=1 // pred_check
      _
    $region31: #{tpu_custom_call.1} parent=1 // pred_check_branch
      %96 = sbr.rel (0) target = $region33
    $region32: #{tpu_custom_call.1} parent=1 // pred_region
      _
    $region33: #{tpu_custom_call.1} parent=1 // pred_fallthru
      _
    // Predicated region
    $region34: #{tpu_custom_call.1} parent=1 // pred_check
      _
    $region35: #{tpu_custom_call.1} parent=1 // pred_check_branch
      %98 = sbr.rel (0) target = $region37
    $region36: #{tpu_custom_call.1} parent=1 // pred_region
      %100 = dma.done [#allocation5], 32
    $region37: #{tpu_custom_call.1} parent=1 // pred_fallthru
      _
    // Predicated region
    $region38: #{tpu_custom_call.1} parent=1 // pred_check
      _
    $region39: #{tpu_custom_call.1} parent=1 // pred_check_branch
      %102 = sbr.rel (0) target = $region41
    $region40: #{tpu_custom_call.1} parent=1 // pred_region
      %104 = dma.done [#allocation8], 32
    $region41: #{tpu_custom_call.1} parent=1 // pred_fallthru
      _
    // Predicated region
    $region42: #{tpu_custom_call.1} parent=1 // pred_check
      _
    $region43: #{tpu_custom_call.1} parent=1 // pred_check_branch
      %106 = sbr.rel (0) target = $region45
    $region44: #{tpu_custom_call.1} parent=1 // pred_region
      %108 = dma.done [#allocation8], 32
    $region45: #{tpu_custom_call.1} parent=1 // pred_fallthru
      _
    // Predicated region
    $region46: #{tpu_custom_call.1} parent=1 // pred_check
      _
    $region47: #{tpu_custom_call.1} parent=1 // pred_check_branch
      %110 = sbr.rel (0) target = $region49
    $region48: #{tpu_custom_call.1} parent=1 // pred_region
      %112 = dma.done [#allocation11], 512
    $region49: #{tpu_custom_call.1} parent=1 // pred_fallthru
      _
    // Predicated region
    $region50: #{tpu_custom_call.1} parent=1 // pred_check
      _
    $region51: #{tpu_custom_call.1} parent=1 // pred_check_branch
      %114 = sbr.rel (0) target = $region53
    $region52: #{tpu_custom_call.1} parent=1 // pred_region
      %116 = dma.done [#allocation11], 512
    $region53: #{tpu_custom_call.1} parent=1 // pred_fallthru
      _
    // Predicated region
    $region54: #{tpu_custom_call.1} parent=1 // pred_check
      _
    $region55: #{tpu_custom_call.1} parent=1 // pred_check_branch
      %118 = sbr.rel (0) target = $region57
    $region56: #{tpu_custom_call.1} parent=1 // pred_region
      %120 = dma.done [#allocation14], 512
    $region57: #{tpu_custom_call.1} parent=1 // pred_fallthru
      _
    %p121 = scmp.eq.s32.totalorder 0, 0
    // Predicated region
    $region58: #{tpu_custom_call.1} parent=1 // pred_check
      %p122 = pneg %p121
    $region59: #{tpu_custom_call.1} parent=1 // pred_check_branch
      %124 = sbr.rel (%p122) target = $region61
    $region60: #{tpu_custom_call.1} parent=1 // pred_region
      %v125 = vld [vmem:[#allocation7] sm:$0x3]
      %vm126 = vcmask 254976
      %127 = vst.msk [vmem:[#allocation2] sm:$0x3] %vm126, %v125
      %v128 = vld [vmem:[#allocation9] sm:$0x3]
      %129 = vst.msk [vmem:[#allocation3] sm:$0x3] %vm126, %v128
    $region61: #{tpu_custom_call.1} parent=1 // pred_fallthru
      _
    %v130 = vld [vmem:[#allocation4] sm:$0x3]
    %v131 = vld [vmem:[#allocation2] sm:$0x3]
    %v132 = vld [vmem:[#allocation3] sm:$0x3]
    %v133 = vld [vmem:[#allocation10] sm:$0xff]
    %v134 = vld [vmem:[#allocation10 + $0x8] sm:$0xff]
    %v135 = vld [vmem:[#allocation10 + $0x10] sm:$0xff]
    %v136 = vld [vmem:[#allocation10 + $0x18] sm:$0xff]
    %v137 = vld [vmem:[#allocation12] sm:$0xff]
    %v138 = vld [vmem:[#allocation12 + $0x8] sm:$0xff]
    %v139 = vld [vmem:[#allocation12 + $0x10] sm:$0xff]
    %v140 = vld [vmem:[#allocation12 + $0x18] sm:$0xff]
    %vm141 = vcmask 261120
    %v143 = vsel %vm141, %v131, 0
    %145 = vmatpush.msra.mxu0 0.0
    %146 = vmatpush.msra.mxu0 0.0
    %147 = vmatpush.msra.mxu0 0.0
    %148 = vmatpush.msra.mxu0 0.0
    %149 = vmatpush.msra.mxu0 0.0
    %150 = vmatpush.msra.mxu0 0.0
    %151 = vmatpush.msra.mxu0 0.0
    %152 = vmatpush.msra.mxu0 0.0
    %153 = vmatpush.msra.mxu0 0.0
    %154 = vmatpush.msra.mxu0 0.0
    %155 = vmatpush.msra.mxu0 0.0
    %156 = vmatpush.msra.mxu0 0.0
    %157 = vmatpush.msra.mxu0 %v140
    %158 = vmatpush.msra.mxu0 %v139
    %159 = vmatpush.msra.mxu0 %v138
    %160 = vmatpush.msra.mxu0 %v137
    %161 = vmatmul.f32.gmra.mxu0 %v143
    %v162 = vpop.f32.mrf.mxu0
    %v163 = vadd.f32 0.0, %v162
    %164 = vdwg.mxu0
    %v166 = vsel %vm141, %v130, 0
    %168 = vmatpush.msra.mxu0 0.0
    %169 = vmatpush.msra.mxu0 0.0
    %170 = vmatpush.msra.mxu0 0.0
    %171 = vmatpush.msra.mxu0 0.0
    %172 = vmatpush.msra.mxu0 0.0
    %173 = vmatpush.msra.mxu0 0.0
    %174 = vmatpush.msra.mxu0 0.0
    %175 = vmatpush.msra.mxu0 0.0
    %176 = vmatpush.msra.mxu0 0.0
    %177 = vmatpush.msra.mxu0 0.0
    %178 = vmatpush.msra.mxu0 0.0
    %179 = vmatpush.msra.mxu0 0.0
    %180 = vmatpush.msra.mxu0 %v136
    %181 = vmatpush.msra.mxu0 %v135
    %182 = vmatpush.msra.mxu0 %v134
    %183 = vmatpush.msra.mxu0 %v133
    %184 = vmatmul.f32.gmra.mxu0 %v166
    %v185 = vpop.f32.mrf.mxu0
    %v186 = vadd.f32 %v163, %v185
    %187 = vdwg.mxu0
    %v188 = vld [vmem:[%s5] sm:$0x1]
    %v190 = vperm.slane %v188, 0
    %v192 = vadd.f32 %v186, %v190
    %v193 = vxor.u32 %v192, 2147483648
    %v194 = vmul.f32 %v193, 1.442695
    %v195 = vpow.pop %v194
    %v196 = vadd.f32 %v195, 1.0
    %v197 = vrcp.pop %v196
    %v198 = vmul.f32 %v196, %v197
    %v199 = vsub.f32 1.0, %v198
    %v200 = vmul.f32 %v197, %v199
    %v201 = vadd.f32 %v197, %v200
    %vm202 = vweird.f32 %v196
    %vm203 = vweird.f32 %v197
    %vm204 = vmor %vm202, %vm203
    %v205 = vsel %vm204, %v197, %v201
    %v206 = vand.u32 2147483647, %v196
    %vm207 = vcmp.eq.f32.partialorder %v206, 8.507059e+37
    %v208 = vand.u32 %v196, 2147483648
    %v209 = vor.u32 1.1754944e-38, %v208
    %v210 = vsel %vm207, %v209, %v205
    %v211 = vmul.f32 1.0, %v210
    %v212 = vtanh.pop %v192
    %214 = vrot.lane.b32.xlu0 %v132, 32
    %v215 = vpop.permute.xlu0 %214
    %v217 = vmul.f32 %v211, %v215
    %219 = vrot.lane.b32.xlu0 %v212, 64
    %v220 = vpop.permute.xlu0 %219
    %v222 = vmul.f32 %v211, %v220
    %224 = vrot.lane.b32.xlu0 %v222, 32
    %v225 = vpop.permute.xlu0 %224
    %v227 = vadd.f32 %v217, %v225
    %v228 = vtanh.pop %v227
    %230 = vrot.lane.b32.xlu0 %v228, 64
    %v231 = vpop.permute.xlu0 %230
    %v233 = vmul.f32 %v211, %v231
    %235 = vrot.lane.b32.xlu0 %v233, 32
    %v236 = vpop.permute.xlu0 %235
    %vm238 = vcmask 254976
    %239 = vst.msk [vmem:[#allocation2] sm:$0x3] %vm238, %v236
    %241 = vrot.lane.b32.xlu0 %v227, 96
    %v242 = vpop.permute.xlu0 %241
    %244 = vst.msk [vmem:[#allocation3] sm:$0x3] %vm238, %v242
    %v245 = vld [vmem:[#allocation13] sm:$0xff]
    %v246 = vld [vmem:[#allocation13 + $0x8] sm:$0xff]
    %v247 = vld [vmem:[#allocation13 + $0x10] sm:$0xff]
    %v248 = vld [vmem:[#allocation13 + $0x18] sm:$0xff]
    %v249 = vld [vmem:[%s7] sm:$0x1]
    %v251 = vperm.slane %v249, 0
    %v253 = vsel %vm141, %v236, 0
    %255 = vmatpush.msra.mxu0 0.0
    %256 = vmatpush.msra.mxu0 0.0
    %257 = vmatpush.msra.mxu0 0.0
    %258 = vmatpush.msra.mxu0 0.0
    %259 = vmatpush.msra.mxu0 0.0
    %260 = vmatpush.msra.mxu0 0.0
    %261 = vmatpush.msra.mxu0 0.0
    %262 = vmatpush.msra.mxu0 0.0
    %263 = vmatpush.msra.mxu0 0.0
    %264 = vmatpush.msra.mxu0 0.0
    %265 = vmatpush.msra.mxu0 0.0
    %266 = vmatpush.msra.mxu0 0.0
    %267 = vmatpush.msra.mxu0 %v248
    %268 = vmatpush.msra.mxu0 %v247
    %269 = vmatpush.msra.mxu0 %v246
    %270 = vmatpush.msra.mxu0 %v245
    %271 = vmatmul.f32.gmra.mxu0 %v253
    %v272 = vpop.f32.mrf.mxu0
    %v273 = vadd.f32 %v251, %v272
    %274 = vdwg.mxu0
    %vm275 = vcmask 1041408
    %v276 = vsel %vm275, %v273, -inf
    %277 = vmax.xlane.f32.xlu0 %v276
    %v278 = vpop.xlane.xlu0 %277
    %v279 = vsub.f32 %v273, %v278
    %v280 = vmul.f32 %v279, 1.442695
    %v281 = vpow.pop %v280
    %v282 = vsel %vm275, %v281, 0.0
    %283 = vadd.xlane.f32.xlu0 %v282
    %v284 = vpop.xlane.xlu0 %283
    %v285 = vlog2.pop %v284
    %v286 = vmul.f32 %v285, 0.6931472
    %v287 = vsub.f32 %v279, %v286
    %288 = vst [vmem:[#allocation15] sm:$0x3] %v287
    // Predicated region
    $region62: #{tpu_custom_call.1} parent=1 // pred_check
      %p289 = pneg %p121
    $region63: #{tpu_custom_call.1} parent=1 // pred_check_branch
      %291 = sbr.rel (%p289) target = $region65
    $region64: #{tpu_custom_call.1} parent=1 // pred_region
      %292 = vst.msk [vmem:[#allocation16] sm:$0x3] %vm238, %v236
      %vm293 = vcmask 517376
      %294 = vst.msk [vmem:[#allocation16] sm:$0x3] %vm293, %v227
    $region65: #{tpu_custom_call.1} parent=1 // pred_fallthru
      _
    // Predicated region
    $region66: #{tpu_custom_call.1} parent=1 // pred_check
      _
    $region67: #{tpu_custom_call.1} parent=1 // pred_check_branch
      %296 = sbr.rel (0) target = $region69
    $region68: #{tpu_custom_call.1} parent=1 // pred_region
      %298 = vsyncadd [#allocation6], 0
      %s300 = sshll.u32 [#allocation15], 4
      %s301 = int_to_ptr.vmem [resolvable:$true] %s300
      %s302 = sshll.u32 %s8, 4
      %s303 = int_to_ptr.hbm [resolvable:$true] %s302
      %305 = dma.vmem_to_hbm [thread:$0]  %s301, 32, %s303, [#allocation6]
    $region69: #{tpu_custom_call.1} parent=1 // pred_fallthru
      _
    // Predicated region
    $region70: #{tpu_custom_call.1} parent=1 // pred_check
      _
    $region71: #{tpu_custom_call.1} parent=1 // pred_check_branch
      %307 = sbr.rel (0) target = $region73
    $region72: #{tpu_custom_call.1} parent=1 // pred_region
      %309 = vsyncadd [#allocation17], 0
      %s311 = sshll.u32 [#allocation16], 4
      %s312 = int_to_ptr.vmem [resolvable:$true] %s311
      %s313 = sshll.u32 %s9, 4
      %s314 = int_to_ptr.hbm [resolvable:$true] %s313
      %316 = dma.vmem_to_hbm [thread:$0]  %s312, 32, %s314, [#allocation17]
    $region73: #{tpu_custom_call.1} parent=1 // pred_fallthru
      _
    // Predicated region
    $region74: #{tpu_custom_call.1} parent=1 // pred_check
      _
    $region75: #{tpu_custom_call.1} parent=1 // pred_check_branch
      %318 = sbr.rel (0) target = $region77
    $region76: #{tpu_custom_call.1} parent=1 // pred_region
      %320 = dma.done [#allocation6], 32
    $region77: #{tpu_custom_call.1} parent=1 // pred_fallthru
      _
    // Predicated region
    $region78: #{tpu_custom_call.1} parent=1 // pred_check
      _
    $region79: #{tpu_custom_call.1} parent=1 // pred_check_branch
      %322 = sbr.rel (0) target = $region81
    $region80: #{tpu_custom_call.1} parent=1 // pred_region
      %324 = dma.done [#allocation17], 32
    $region81: #{tpu_custom_call.1} parent=1 // pred_fallthru
      _
    %325 = vsyncpa [#allocation5], 1
    %326 = vsyncpa [#allocation8], 1
    %327 = vsyncpa [#allocation11], 1
    %328 = vsyncpa [#allocation14], 1
    %329 = vsyncpa [#allocation6], 1
    %330 = vsyncpa [#allocation17], 1

</llo_original>
